<compile_context>
chip_gen: v6e
topology: v6e:2x2x1
jax: 0.10.0
libtpu: 0.0.40
codegen_flags: <defaults>
</compile_context>

<pallas_src>
import jax
import jax.numpy as jnp
from jax.experimental import pallas as pl
from jax.experimental.pallas import tpu as pltpu


def _cdiv(a: int, b: int) -> int:
    return (a + b - 1) // b


def _choose_batch_tiling(B: int, tile_b_cap: int = 8192):
    """Pick (tile_b, num_tiles); tile_b is a multiple of 128.

    Goals (per generation review):
      * tile as large as possible (amortize ~0.35 us / ~600 cyc per-step overhead),
        capped so the f32 temporaries stay well inside v7x's 64 MiB VMEM,
      * >= 2 (even) grid steps once there is enough work so the "parallel" batch
        axis can shard over v7x's two TensorCores,
      * minimal padding waste (tile derived from cdiv, not the raw cap).
    """
    chunks = _cdiv(max(B, 1), 128)              # 128-row units of real work
    cap_chunks = max(1, tile_b_cap // 128)
    num_tiles = _cdiv(chunks, cap_chunks)
    if num_tiles == 1 and chunks >= 16:         # enough work -> let megacore split it
        num_tiles = 2
    elif num_tiles > 1 and num_tiles % 2:       # keep the step count even for 2 TCs
        num_tiles += 1
    tile_b = _cdiv(chunks, num_tiles) * 128
    return tile_b, num_tiles


def dict_input_net_kernel(x_ref, w1_ref, b1_ref, w2_ref, b2_ref, w3_ref,
                          alpha_ref, b3_ref, y_ref):
    x = x_ref[...]                                                   # (TB, 50) f32

    # fc1 + ReLU  (bf16 MXU operands, f32 accumulation; elementwise stays f32)
    a1 = jnp.dot(x.astype(jnp.bfloat16), w1_ref[...],
                 preferred_element_type=jnp.float32) + b1_ref[...]
    h1 = jnp.maximum(a1, 0.0)                                        # (TB, 50) f32

    # Dropout(0.2): identity in eval mode (PyTorch inverted dropout).
    # TODO(synk): training-mode dropout mask (pltpu.prng_random_bits) not emitted.

    # fc2 + PReLU(1) -- single shared slope, scalar read from SMEM.
    a2 = jnp.dot(h1.astype(jnp.bfloat16), w2_ref[...],
                 preferred_element_type=jnp.float32) + b2_ref[...]
    alpha = alpha_ref[0]
    h2 = jnp.where(a2 >= 0.0, a2, alpha * a2)                        # (TB, 100) f32

    # out (100 -> 1): contract (1,100) with (TB,100) over the feature axis.
    # This is the same last-dim/last-dim contraction as flash-attention's q @ k.T,
    # lowered with a transposed-RHS MXU feed (no XLU transpose of the big h2 tile),
    # and produces a lane-dense (1, TB) row per grid step.
    a3 = jax.lax.dot_general(
        w3_ref[...], h2.astype(jnp.bfloat16),
        dimension_numbers=(((1,), (1,)), ((), ())),
        preferred_element_type=jnp.float32)                          # (1, TB) f32
    z = a3 + b3_ref[0]

    # Sigmoid: exp on the EUP + approximate reciprocal on the EUP (no VALU divide).
    y_ref[...] = pl.reciprocal(1.0 + jnp.exp(-z), approx=True)


def dict_input_net_forward(inputs, params, *, tile_b_cap: int = 8192,
                           xla_fallback_below: int = 0):
    """Forward pass.  inputs: {'x': (B, 50) f32}.  Returns (B, 1) f32.

    `xla_fallback_below`: batches smaller than this use the plain-XLA reference path
    (a single-tile pallas_call is pure launch overhead for ~10 us problems).  Default 0
    so the Pallas kernel always runs here; ~512 is a reasonable production setting.
    """
    x = inputs["x"].astype(jnp.float32)
    w1, b1, w2, b2, w3, alpha, b3 = params
    B = x.shape[0]

    if B < xla_fallback_below:
        return reference_forward(x, params)

    tile_b, num_tiles = _choose_batch_tiling(B, tile_b_cap)
    b_pad = tile_b * num_tiles
    if b_pad != B:
        x = jnp.pad(x, ((0, b_pad - B), (0, 0)))

    # bf16 MXU operands: weights pre-cast once (tiny, VMEM-resident across steps).
    # x stays f32 over HBM and is cast at the dot inside the kernel; if upstream can
    # already supply bf16 x, passing it straight through would also halve the dominant
    # HBM stream (biggest lever on v5e's ~0.82 TB/s HBM).
    w1b = w1.astype(jnp.bfloat16)
    w2b = w2.astype(jnp.bfloat16)
    w3b = w3.astype(jnp.bfloat16)

    def resident(shape):
        # Weight/bias blocks that never move across grid steps (constant index_map).
        return pl.BlockSpec(shape, lambda i: (0,) * len(shape))

    smem_scalar = pl.BlockSpec((1,), lambda i: (0,),
                               memory_space=pltpu.MemorySpace.SMEM)

    out = pl.pallas_call(
        dict_input_net_kernel,
        out_shape=jax.ShapeDtypeStruct((num_tiles, 1, tile_b), jnp.float32),
        grid=(num_tiles,),
        in_specs=[
            # x tile, software-pipelined.  (On v5e, pipeline_mode=pl.Buffered(3)
            # here is an option if the x DMA is ever exposed.)
            pl.BlockSpec((tile_b, 50), lambda i: (i, 0)),
            resident((50, 50)),                         # w1 (in, out)  bf16
            resident((1, 50)),                          # b1            f32
            resident((50, 100)),                        # w2 (in, out)  bf16
            resident((1, 100)),                         # b2            f32
            resident((1, 100)),                         # w3 (out=1,in) bf16
            smem_scalar,                                # alpha (PReLU slope)
            smem_scalar,                                # b3
        ],
        # Leading dim squeezed -> kernel sees a lane-dense (1, tile_b) block whose
        # last two dims equal the full array's last two dims.
        out_specs=pl.BlockSpec((None, 1, tile_b), lambda i: (i, 0, 0)),
        compiler_params=pltpu.CompilerParams(
            dimension_semantics=("parallel",),
            vmem_limit_bytes=48 * 1024 * 1024,
        ),
    )(x, w1b, b1, w2b, b2, w3b, alpha, b3)

    return out.reshape(b_pad, 1)[:B]


def reference_forward(x, params):
    """Pure-JAX reference matching the PyTorch module (eval mode)."""
    w1, b1, w2, b2, w3, alpha, b3 = params
    hp = jax.lax.Precision.HIGHEST
    a1 = jnp.dot(x, w1, precision=hp) + b1
    h1 = jnp.maximum(a1, 0.0)
    a2 = jnp.dot(h1, w2, precision=hp) + b2
    h2 = jnp.where(a2 >= 0.0, a2, alpha[0] * a2)
    a3 = jnp.dot(h2, w3.T, precision=hp) + b3
    return jax.nn.sigmoid(a3)


def init_params(key):
    """PyTorch-default-style init (uniform +/- 1/sqrt(fan_in)).
    fc1/fc2 weights stored as (in, out); final weight kept in native PyTorch
    (out=1, in=100) row layout for the transposed final dot."""
    k1, k2, k3, k4, k5, k6 = jax.random.split(key, 6)

    def lin_t(kw, kb, fan_in, fan_out):
        bound = 1.0 / jnp.sqrt(jnp.float32(fan_in))
        w = jax.random.uniform(kw, (fan_in, fan_out), jnp.float32, -bound, bound)
        b = jax.random.uniform(kb, (1, fan_out), jnp.float32, -bound, bound)
        return w, b

    w1, b1 = lin_t(k1, k2, 50, 50)
    w2, b2 = lin_t(k3, k4, 50, 100)
    bound3 = 1.0 / jnp.sqrt(jnp.float32(100))
    w3 = jax.random.uniform(k5, (1, 100), jnp.float32, -bound3, bound3)
    b3 = jax.random.uniform(k6, (1,), jnp.float32, -bound3, bound3)
    alpha = jnp.full((1,), 0.25, jnp.float32)       # nn.PReLU(1) default init
    return (w1, b1, w2, b2, w3, alpha, b3)


if __name__ == "__main__":
    key = jax.random.PRNGKey(0)
    k_params, k_x1, k_x2 = jax.random.split(key, 3)
    params = init_params(k_params)

    # Case 1: tiny batch (single 128-row tile, padded).
    # Case 2: small batch with a reduced tile cap to exercise the multi-tile
    #         ("parallel" grid, even step count) + padding path.
    cases = [(k_x1, 8, 8192), (k_x2, 300, 256)]
    for k_x, batch, cap in cases:
        x = jax.random.normal(k_x, (batch, 50), jnp.float32)
        y = jax.block_until_ready(
            dict_input_net_forward({"x": x}, params, tile_b_cap=cap))
        y_ref = reference_forward(x, params)
        assert y.shape == (batch, 1)
        assert bool(jnp.all(jnp.isfinite(y)))
        assert bool(jnp.allclose(y, y_ref, rtol=5e-3, atol=5e-3))

    print("KERNEL_OK")
</pallas_src>

<mosaic_0001>
module attributes {stable_mosaic.version = 11 : i64} {
  func.func @dict_input_net_kernel(%arg0: i32, %arg1: memref<128x50xf32, #tpu.memory_space<vmem>>, %arg2: memref<50x50xbf16, #tpu.memory_space<vmem>>, %arg3: memref<1x50xf32, #tpu.memory_space<vmem>>, %arg4: memref<50x100xbf16, #tpu.memory_space<vmem>>, %arg5: memref<1x100xf32, #tpu.memory_space<vmem>>, %arg6: memref<1x100xbf16, #tpu.memory_space<vmem>>, %arg7: memref<1xf32, #tpu.memory_space<smem>>, %arg8: memref<1xf32, #tpu.memory_space<smem>>, %arg9: memref<1x1x128xf32, #tpu.memory_space<vmem>>) attributes {dimension_semantics = [#tpu.dimension_semantics<parallel>], iteration_bounds = array<i64: 1>, scalar_prefetch = 0 : i64, scratch_operands = 0 : i64, tpu.core_type = #tpu.core_type<tc>, window_params = [{transform_indices = @transform_0, window_bounds = array<i64: 128, 50>}, {pipeline_mode = #tpu.pipeline_mode<synchronous>, transform_indices = @transform_1, window_bounds = array<i64: 50, 50>}, {pipeline_mode = #tpu.pipeline_mode<synchronous>, transform_indices = @transform_2, window_bounds = array<i64: 1, 50>}, {pipeline_mode = #tpu.pipeline_mode<synchronous>, transform_indices = @transform_3, window_bounds = array<i64: 50, 100>}, {pipeline_mode = #tpu.pipeline_mode<synchronous>, transform_indices = @transform_4, window_bounds = array<i64: 1, 100>}, {pipeline_mode = #tpu.pipeline_mode<synchronous>, transform_indices = @transform_5, window_bounds = array<i64: 1, 100>}, {transform_indices = @transform_6, window_bounds = array<i64: 1>}, {transform_indices = @transform_7, window_bounds = array<i64: 1>}, {transform_indices = @transform_8, window_bounds = array<i64: 1, 1, 128>}]} {
    %c0 = arith.constant 0 : index
    %c0_0 = arith.constant 0 : index
    %0 = vector.load %arg1[%c0, %c0_0] : memref<128x50xf32, #tpu.memory_space<vmem>>, vector<128x50xf32>
    %1 = arith.truncf %0 : vector<128x50xf32> to vector<128x50xbf16>
    %c0_1 = arith.constant 0 : index
    %c0_2 = arith.constant 0 : index
    %2 = vector.load %arg2[%c0_1, %c0_2] : memref<50x50xbf16, #tpu.memory_space<vmem>>, vector<50x50xbf16>
    %cst = arith.constant dense<0.000000e+00> : vector<128x50xf32>
    %3 = tpu.matmul %1, %2, %cst {dimension_numbers = #tpu.dot_dimension_numbers<[1], [0], [0], [1], [0, 0, 1, 1], [], []>} : vector<128x50xbf16>, vector<50x50xbf16>, vector<128x50xf32> -> vector<128x50xf32>
    %c0_3 = arith.constant 0 : index
    %c0_4 = arith.constant 0 : index
    %4 = vector.load %arg3[%c0_3, %c0_4] : memref<1x50xf32, #tpu.memory_space<vmem>>, vector<1x50xf32>
    %5 = vector.broadcast %4 : vector<1x50xf32> to vector<128x50xf32>
    %6 = arith.addf %3, %5 : vector<128x50xf32>
    %cst_5 = arith.constant 0.000000e+00 : f32
    %7 = vector.broadcast %cst_5 : f32 to vector<128x50xf32>
    %8 = arith.maximumf %6, %7 : vector<128x50xf32>
    %9 = arith.truncf %8 : vector<128x50xf32> to vector<128x50xbf16>
    %c0_6 = arith.constant 0 : index
    %c0_7 = arith.constant 0 : index
    %10 = vector.load %arg4[%c0_6, %c0_7] : memref<50x100xbf16, #tpu.memory_space<vmem>>, vector<50x100xbf16>
    %cst_8 = arith.constant dense<0.000000e+00> : vector<128x100xf32>
    %11 = tpu.matmul %9, %10, %cst_8 {dimension_numbers = #tpu.dot_dimension_numbers<[1], [0], [0], [1], [0, 0, 1, 1], [], []>} : vector<128x50xbf16>, vector<50x100xbf16>, vector<128x100xf32> -> vector<128x100xf32>
    %c0_9 = arith.constant 0 : index
    %c0_10 = arith.constant 0 : index
    %12 = vector.load %arg5[%c0_9, %c0_10] : memref<1x100xf32, #tpu.memory_space<vmem>>, vector<1x100xf32>
    %13 = vector.broadcast %12 : vector<1x100xf32> to vector<128x100xf32>
    %14 = arith.addf %11, %13 : vector<128x100xf32>
    %c0_11 = arith.constant 0 : index
    %15 = memref.load %arg7[%c0_11] : memref<1xf32, #tpu.memory_space<smem>>
    %cst_12 = arith.constant 0.000000e+00 : f32
    %16 = vector.broadcast %cst_12 : f32 to vector<128x100xf32>
    %17 = arith.cmpf oge, %14, %16 : vector<128x100xf32>
    %18 = vector.broadcast %15 : f32 to vector<128x100xf32>
    %19 = arith.mulf %18, %14 : vector<128x100xf32>
    %20 = arith.select %17, %14, %19 : vector<128x100xi1>, vector<128x100xf32>
    %c0_13 = arith.constant 0 : index
    %c0_14 = arith.constant 0 : index
    %21 = vector.load %arg6[%c0_13, %c0_14] : memref<1x100xbf16, #tpu.memory_space<vmem>>, vector<1x100xbf16>
    %22 = arith.truncf %20 : vector<128x100xf32> to vector<128x100xbf16>
    %cst_15 = arith.constant dense<0.000000e+00> : vector<1x128xf32>
    %23 = tpu.matmul %21, %22, %cst_15 {dimension_numbers = #tpu.dot_dimension_numbers<[1], [1], [0], [0], [0, 0, 1, 0], [], []>} : vector<1x100xbf16>, vector<128x100xbf16>, vector<1x128xf32> -> vector<1x128xf32>
    %c0_16 = arith.constant 0 : index
    %24 = memref.load %arg8[%c0_16] : memref<1xf32, #tpu.memory_space<smem>>
    %25 = vector.broadcast %24 : f32 to vector<1x128xf32>
    %26 = arith.addf %23, %25 : vector<1x128xf32>
    %cst_17 = arith.constant 0.000000e+00 : f32
    %27 = vector.broadcast %cst_17 : f32 to vector<1x128xf32>
    %28 = arith.subf %27, %26 : vector<1x128xf32>
    %29 = math.exp %28 : vector<1x128xf32>
    %cst_18 = arith.constant 1.000000e+00 : f32
    %30 = vector.broadcast %cst_18 : f32 to vector<1x128xf32>
    %31 = arith.addf %30, %29 : vector<1x128xf32>
    %32 = tpu.reciprocal %31 {approx = true} : vector<1x128xf32> -> vector<1x128xf32>
    %c0_19 = arith.constant 0 : index
    %c0_20 = arith.constant 0 : index
    %c0_21 = arith.constant 0 : index
    %33 = vector.load %arg9[%c0_19, %c0_20, %c0_21] : memref<1x1x128xf32, #tpu.memory_space<vmem>>, vector<1x1x128xf32>
    %34 = vector.shape_cast %33 : vector<1x1x128xf32> to vector<1x128xf32>
    %35 = vector.shape_cast %32 : vector<1x128xf32> to vector<1x1x128xf32>
    tpu.vector_store %arg9[%c0_19, %c0_20, %c0_21], %35 {strides = array<i32>} : memref<1x1x128xf32, #tpu.memory_space<vmem>>, vector<1x1x128xf32>,
    return
  }
  func.func @transform_0(%arg0: i32) -> (i32, i32) {
    %c0_i32 = arith.constant 0 : i32
    %c0_i32_0 = arith.constant 0 : i32
    return %arg0, %c0_i32 : i32, i32
  }
  func.func @transform_1(%arg0: i32) -> (i32, i32) {
    %c0_i32 = arith.constant 0 : i32
    %c0_i32_0 = arith.constant 0 : i32
    %c0_i32_1 = arith.constant 0 : i32
    return %c0_i32, %c0_i32_0 : i32, i32
  }
  func.func @transform_2(%arg0: i32) -> (i32, i32) {
    %c0_i32 = arith.constant 0 : i32
    %c0_i32_0 = arith.constant 0 : i32
    %c0_i32_1 = arith.constant 0 : i32
    return %c0_i32, %c0_i32_0 : i32, i32
  }
  func.func @transform_3(%arg0: i32) -> (i32, i32) {
    %c0_i32 = arith.constant 0 : i32
    %c0_i32_0 = arith.constant 0 : i32
    %c0_i32_1 = arith.constant 0 : i32
    return %c0_i32, %c0_i32_0 : i32, i32
  }
  func.func @transform_4(%arg0: i32) -> (i32, i32) {
    %c0_i32 = arith.constant 0 : i32
    %c0_i32_0 = arith.constant 0 : i32
    %c0_i32_1 = arith.constant 0 : i32
    return %c0_i32, %c0_i32_0 : i32, i32
  }
  func.func @transform_5(%arg0: i32) -> (i32, i32) {
    %c0_i32 = arith.constant 0 : i32
    %c0_i32_0 = arith.constant 0 : i32
    %c0_i32_1 = arith.constant 0 : i32
    return %c0_i32, %c0_i32_0 : i32, i32
  }
  func.func @transform_6(%arg0: i32) -> i32 {
    %c0_i32 = arith.constant 0 : i32
    %c0_i32_0 = arith.constant 0 : i32
    return %c0_i32 : i32
  }
  func.func @transform_7(%arg0: i32) -> i32 {
    %c0_i32 = arith.constant 0 : i32
    %c0_i32_0 = arith.constant 0 : i32
    return %c0_i32 : i32
  }
  func.func @transform_8(%arg0: i32) -> (i32, i32, i32) {
    %c0_i32 = arith.constant 0 : i32
    %c0_i32_0 = arith.constant 0 : i32
    %c0_i32_1 = arith.constant 0 : i32
    return %arg0, %c0_i32, %c0_i32_0 : i32, i32, i32
  }
}

</mosaic_0001>

<llo_original>
// kernel: tpu_custom_call.1
$region0: #{tpu_custom_call.1}
  #allocation0 [shape = 'u32[]', space=smem, size = 0x4, offset = 0x4, fixed_abs, tag = 'smem constant byte address 0x4 - core index']
  #allocation1 [shape = 'u32[144,128]{1,0:T(1,128)}', space=vmem, size = 0x12000, scoped, tag = 'internal scratch']
  #allocation2 [shape = 'f32[1]{0:T(128)S(6)}', space=smem, size = 0x200, scoped, tag = 'scoped memory for tpu_custom_call.1']
  #allocation3 [shape = 'f32[1]{0:T(128)S(6)}', space=smem, size = 0x200, scoped, tag = 'scoped memory for tpu_custom_call.1']
  %s0 = inlined_call_operand.vmem [shape: f32[128,50], index: 0, kind: input, shape index: {}]
  %s1 = inlined_call_operand.vmem [shape: bf16[50,50], index: 1, kind: input, shape index: {}]
  %s2 = inlined_call_operand.vmem [shape: f32[1,50], index: 2, kind: input, shape index: {}]
  %s3 = inlined_call_operand.vmem [shape: bf16[50,100], index: 3, kind: input, shape index: {}]
  %s4 = inlined_call_operand.vmem [shape: f32[1,100], index: 4, kind: input, shape index: {}]
  %s5 = inlined_call_operand.vmem [shape: bf16[1,100], index: 5, kind: input, shape index: {}]
  %s6 = inlined_call_operand.<no memory space> [shape: f32[1], index: 6, kind: input, shape index: {}]
  %s7 = inlined_call_operand.<no memory space> [shape: f32[1], index: 7, kind: input, shape index: {}]
  %s8 = inlined_call_operand.hbm [shape: f32[1,1,128], index: 8, kind: output, shape index: {}]
  %s9 = sld [smem:[#allocation0]]
  $region42: #{tpu_custom_call.1} parent=0
    _
  %s11 = ssub.s32 1, %s9
  %s12 = scalar_select 0, %s11, %s9
  %13 = sst [smem:[#allocation2]] %s6
  %14 = sst [smem:[#allocation3]] %s7
  $region1: #{tpu_custom_call.1} parent=0
    #allocation4 [shape = 'u8[512]{0}', space=vmem, size = 0x400, scoped, tag = 'output window, operand 0, single buffered']
    #allocation5 [shape = 's32[1]{0}', space=sflag, size = 0x4, scoped, tag = 'scoped memory for tpu_custom_call.1']
    %15 = vsyncpa [#allocation5], 0
    // Predicated region
    $region2: #{tpu_custom_call.1} parent=1 // pred_check
      _
    $region3: #{tpu_custom_call.1} parent=1 // pred_check_branch
      %17 = sbr.rel (0) target = $region5
    $region4: #{tpu_custom_call.1} parent=1 // pred_region
      _
    $region5: #{tpu_custom_call.1} parent=1 // pred_fallthru
      _
    // Predicated region
    $region6: #{tpu_custom_call.1} parent=1 // pred_check
      _
    $region7: #{tpu_custom_call.1} parent=1 // pred_check_branch
      %19 = sbr.rel (0) target = $region9
    $region8: #{tpu_custom_call.1} parent=1 // pred_region
      _
    $region9: #{tpu_custom_call.1} parent=1 // pred_fallthru
      _
    // Predicated region
    $region10: #{tpu_custom_call.1} parent=1 // pred_check
      _
    $region11: #{tpu_custom_call.1} parent=1 // pred_check_branch
      %21 = sbr.rel (0) target = $region13
    $region12: #{tpu_custom_call.1} parent=1 // pred_region
      _
    $region13: #{tpu_custom_call.1} parent=1 // pred_fallthru
      _
    // Predicated region
    $region14: #{tpu_custom_call.1} parent=1 // pred_check
      _
    $region15: #{tpu_custom_call.1} parent=1 // pred_check_branch
      %23 = sbr.rel (0) target = $region17
    $region16: #{tpu_custom_call.1} parent=1 // pred_region
      _
    $region17: #{tpu_custom_call.1} parent=1 // pred_fallthru
      _
    // Predicated region
    $region18: #{tpu_custom_call.1} parent=1 // pred_check
      _
    $region19: #{tpu_custom_call.1} parent=1 // pred_check_branch
      %25 = sbr.rel (0) target = $region21
    $region20: #{tpu_custom_call.1} parent=1 // pred_region
      _
    $region21: #{tpu_custom_call.1} parent=1 // pred_fallthru
      _
    // Predicated region
    $region22: #{tpu_custom_call.1} parent=1 // pred_check
      _
    $region23: #{tpu_custom_call.1} parent=1 // pred_check_branch
      %27 = sbr.rel (0) target = $region25
    $region24: #{tpu_custom_call.1} parent=1 // pred_region
      _
    $region25: #{tpu_custom_call.1} parent=1 // pred_fallthru
      _
    // Predicated region
    $region26: #{tpu_custom_call.1} parent=1 // pred_check
      _
    $region27: #{tpu_custom_call.1} parent=1 // pred_check_branch
      %29 = sbr.rel (0) target = $region29
    $region28: #{tpu_custom_call.1} parent=1 // pred_region
      _
    $region29: #{tpu_custom_call.1} parent=1 // pred_fallthru
      _
    // Predicated region
    $region30: #{tpu_custom_call.1} parent=1 // pred_check
      _
    $region31: #{tpu_custom_call.1} parent=1 // pred_check_branch
      %31 = sbr.rel (0) target = $region33
    $region32: #{tpu_custom_call.1} parent=1 // pred_region
      _
    $region33: #{tpu_custom_call.1} parent=1 // pred_fallthru
      _
    %v33 = vld [vmem:[%s0] sm:$0xff]
    %v34 = vld [vmem:[%s0 + $0x8] sm:$0xff]
    %v35 = vld [vmem:[%s0 + $0x10] sm:$0xff]
    %v36 = vld [vmem:[%s0 + $0x18] sm:$0xff]
    %v37 = vld [vmem:[%s0 + $0x20] sm:$0xff]
    %v38 = vld [vmem:[%s0 + $0x28] sm:$0xff]
    %v39 = vld [vmem:[%s0 + $0x30] sm:$0xff]
    %v40 = vld [vmem:[%s0 + $0x38] sm:$0xff]
    %v41 = vld [vmem:[%s0 + $0x40] sm:$0xff]
    %v42 = vld [vmem:[%s0 + $0x48] sm:$0xff]
    %v43 = vld [vmem:[%s0 + $0x50] sm:$0xff]
    %v44 = vld [vmem:[%s0 + $0x58] sm:$0xff]
    %v45 = vld [vmem:[%s0 + $0x60] sm:$0xff]
    %v46 = vld [vmem:[%s0 + $0x68] sm:$0xff]
    %v47 = vld [vmem:[%s0 + $0x70] sm:$0xff]
    %v48 = vld [vmem:[%s0 + $0x78] sm:$0xff]
    %v49 = vpack.c.bf16 %v34, %v33
    %v50 = vpack.c.bf16 %v36, %v35
    %v51 = vpack.c.bf16 %v38, %v37
    %v52 = vpack.c.bf16 %v40, %v39
    %v53 = vpack.c.bf16 %v42, %v41
    %v54 = vpack.c.bf16 %v44, %v43
    %v55 = vpack.c.bf16 %v46, %v45
    %v56 = vpack.c.bf16 %v48, %v47
    %v57 = vld [vmem:[%s1] sm:$0xf]
    %v58 = vld [vmem:[%s1 + $0x4] sm:$0xf]
    %v59 = vld [vmem:[%s1 + $0x8] sm:$0xf]
    %v60 = vld [vmem:[%s1 + $0xc] sm:$0xf]
    %v61 = vld [vmem:[%s1 + $0x10] sm:$0xf]
    %v62 = vld [vmem:[%s1 + $0x14] sm:$0xf]
    %v63 = vld [vmem:[%s1 + $0x18] sm:$0x1]
    %v64 = vld [vmem:[%s2] sm:$0x1]
    %v66 = vlaneseq
    %v67 = vshrl.u32 %v66, 7
    %v68 = vsub.s32 0, %v67
    %v69 = vrot.slane %v64, %v68
    %v78 = vunpack.c.l.b16 %v57
    %v79 = vunpack.c.l.b16 %v58
    %v80 = vunpack.c.l.b16 %v59
    %v81 = vunpack.c.l.b16 %v60
    %v82 = vunpack.c.l.b16 %v61
    %v83 = vunpack.c.l.b16 %v62
    %v84 = vunpack.c.l.b16 %v63
    %v85 = vpack.c.b16 %v79, %v78
    %v86 = vpack.c.b16 %v81, %v80
    %v87 = vpack.c.b16 %v83, %v82
    %v88 = vpack.c.b16 %v84, %v84
    %vm92 = vcmask 408576
    %v94 = vsel %vm92, %v49, 0
    %v97 = vsel %vm92, %v50, 0
    %v100 = vsel %vm92, %v51, 0
    %v103 = vsel %vm92, %v52, 0
    %v106 = vsel %vm92, %v53, 0
    %v109 = vsel %vm92, %v54, 0
    %v112 = vsel %vm92, %v55, 0
    %v115 = vsel %vm92, %v56, 0
    %vm117 = vcmask 1040384
    %v119 = vsel %vm117, %v88, 0
    %121 = vmatprep.subr.bf16.mxu0 0
    %122 = vmatpush1.bf16.msra.mxu0 0
    %123 = vmatprep.subr.bf16.mxu0 0
    %124 = vmatpush1.bf16.msra.mxu0 0
    %125 = vmatprep.subr.bf16.mxu0 0
    %126 = vmatpush1.bf16.msra.mxu0 0
    %127 = vmatprep.subr.bf16.mxu0 0
    %128 = vmatpush1.bf16.msra.mxu0 0
    %129 = vmatprep.subr.bf16.mxu0 0
    %130 = vmatpush1.bf16.msra.mxu0 %v119
    %131 = vmatprep.subr.bf16.mxu0 0
    %132 = vmatpush1.bf16.msra.mxu0 %v87
    %133 = vmatprep.subr.bf16.mxu0 0
    %134 = vmatpush1.bf16.msra.mxu0 %v86
    %135 = vmatprep.subr.bf16.mxu0 0
    %136 = vmatpush1.bf16.msra.mxu0 %v85
    %137 = vmatprep.subr.bf16.mxu0 0
    %138 = vmatpush2.bf16.msra.mxu0 0
    %139 = vmatprep.subr.bf16.mxu0 0
    %140 = vmatpush2.bf16.msra.mxu0 0
    %141 = vmatprep.subr.bf16.mxu0 0
    %142 = vmatpush2.bf16.msra.mxu0 0
    %143 = vmatprep.subr.bf16.mxu0 0
    %144 = vmatpush2.bf16.msra.mxu0 0
    %145 = vmatprep.subr.bf16.mxu0 0
    %146 = vmatpush2.bf16.msra.mxu0 0
    %147 = vmatprep.subr.bf16.mxu0 0
    %148 = vmatpush2.bf16.msra.mxu0 0
    %149 = vmatprep.subr.bf16.mxu0 0
    %150 = vmatpush2.bf16.msra.mxu0 0
    %151 = vmatprep.subr.bf16.mxu0 0
    %152 = vmatpush2.bf16.msra.mxu0 0
    %153 = vmatprep.mubr.bf16.mxu0 0
    %154 = vmatmul.mubr.bf16.gmra.mxu0 %v94
    %v155 = vpop.f32.mrf.mxu0
    %v156 = vadd.f32 %v69, %v155
    %v157 = vpop.f32.mrf.mxu0
    %v158 = vpop.f32.mrf.mxu0
    %v159 = vadd.f32 %v69, %v158
    %v160 = vpop.f32.mrf.mxu0
    %161 = vmatprep.mubr.bf16.mxu0 0
    %162 = vmatmul.mubr.bf16.gmra.mxu0 %v97
    %v163 = vpop.f32.mrf.mxu0
    %v164 = vadd.f32 %v69, %v163
    %v165 = vpop.f32.mrf.mxu0
    %v166 = vpop.f32.mrf.mxu0
    %v167 = vadd.f32 %v69, %v166
    %v168 = vpop.f32.mrf.mxu0
    %169 = vmatprep.mubr.bf16.mxu0 0
    %170 = vmatmul.mubr.bf16.gmra.mxu0 %v100
    %v171 = vpop.f32.mrf.mxu0
    %v172 = vadd.f32 %v69, %v171
    %v173 = vpop.f32.mrf.mxu0
    %v174 = vpop.f32.mrf.mxu0
    %v175 = vadd.f32 %v69, %v174
    %v176 = vpop.f32.mrf.mxu0
    %177 = vmatprep.mubr.bf16.mxu0 0
    %178 = vmatmul.mubr.bf16.gmra.mxu0 %v103
    %v179 = vpop.f32.mrf.mxu0
    %v180 = vadd.f32 %v69, %v179
    %v181 = vpop.f32.mrf.mxu0
    %v182 = vpop.f32.mrf.mxu0
    %v183 = vadd.f32 %v69, %v182
    %v184 = vpop.f32.mrf.mxu0
    %185 = vmatprep.mubr.bf16.mxu0 0
    %186 = vmatmul.mubr.bf16.gmra.mxu0 %v106
    %v187 = vpop.f32.mrf.mxu0
    %v188 = vadd.f32 %v69, %v187
    %v189 = vpop.f32.mrf.mxu0
    %v190 = vpop.f32.mrf.mxu0
    %v191 = vadd.f32 %v69, %v190
    %v192 = vpop.f32.mrf.mxu0
    %193 = vmatprep.mubr.bf16.mxu0 0
    %194 = vmatmul.mubr.bf16.gmra.mxu0 %v109
    %v195 = vpop.f32.mrf.mxu0
    %v196 = vadd.f32 %v69, %v195
    %v197 = vpop.f32.mrf.mxu0
    %v198 = vpop.f32.mrf.mxu0
    %v199 = vadd.f32 %v69, %v198
    %v200 = vpop.f32.mrf.mxu0
    %201 = vmatprep.mubr.bf16.mxu0 0
    %202 = vmatmul.mubr.bf16.gmra.mxu0 %v112
    %v203 = vpop.f32.mrf.mxu0
    %v204 = vadd.f32 %v69, %v203
    %v205 = vpop.f32.mrf.mxu0
    %v206 = vpop.f32.mrf.mxu0
    %v207 = vadd.f32 %v69, %v206
    %v208 = vpop.f32.mrf.mxu0
    %209 = vmatprep.mubr.bf16.mxu0 0
    %210 = vmatmul.mubr.bf16.gmra.mxu0 %v115
    %v211 = vpop.f32.mrf.mxu0
    %v212 = vadd.f32 %v69, %v211
    %v213 = vpop.f32.mrf.mxu0
    %v214 = vpop.f32.mrf.mxu0
    %v215 = vadd.f32 %v69, %v214
    %v216 = vpop.f32.mrf.mxu0
    %217 = vdwg.mxu0
    %v218 = vmax.f32 %v156, 0.0
    %v219 = vmax.f32 %v159, 0.0
    %v220 = vmax.f32 %v164, 0.0
    %v221 = vmax.f32 %v167, 0.0
    %v222 = vmax.f32 %v172, 0.0
    %v223 = vmax.f32 %v175, 0.0
    %v224 = vmax.f32 %v180, 0.0
    %v225 = vmax.f32 %v183, 0.0
    %v226 = vmax.f32 %v188, 0.0
    %v227 = vmax.f32 %v191, 0.0
    %v228 = vmax.f32 %v196, 0.0
    %v229 = vmax.f32 %v199, 0.0
    %v230 = vmax.f32 %v204, 0.0
    %v231 = vmax.f32 %v207, 0.0
    %v232 = vmax.f32 %v212, 0.0
    %v233 = vmax.f32 %v215, 0.0
    %v234 = vpack.c.bf16 %v219, %v218
    %v235 = vpack.c.bf16 %v221, %v220
    %v236 = vpack.c.bf16 %v223, %v222
    %v237 = vpack.c.bf16 %v225, %v224
    %v238 = vpack.c.bf16 %v227, %v226
    %v239 = vpack.c.bf16 %v229, %v228
    %v240 = vpack.c.bf16 %v231, %v230
    %v241 = vpack.c.bf16 %v233, %v232
    %v242 = vld [vmem:[%s3] sm:$0xf]
    %v243 = vld [vmem:[%s3 + $0x4] sm:$0xf]
    %v244 = vld [vmem:[%s3 + $0x8] sm:$0xf]
    %v245 = vld [vmem:[%s3 + $0xc] sm:$0xf]
    %v246 = vld [vmem:[%s3 + $0x10] sm:$0xf]
    %v247 = vld [vmem:[%s3 + $0x14] sm:$0xf]
    %v248 = vld [vmem:[%s3 + $0x18] sm:$0x1]
    %v249 = vld [vmem:[%s4] sm:$0x1]
    %v251 = vlaneseq
    %v252 = vshrl.u32 %v251, 7
    %v253 = vsub.s32 0, %v252
    %v254 = vrot.slane %v249, %v253
    %v263 = vunpack.c.l.b16 %v242
    %v264 = vunpack.c.l.b16 %v243
    %v265 = vunpack.c.l.b16 %v244
    %v266 = vunpack.c.l.b16 %v245
    %v267 = vunpack.c.l.b16 %v246
    %v268 = vunpack.c.l.b16 %v247
    %v269 = vunpack.c.l.b16 %v248
    %v270 = vpack.c.b16 %v264, %v263
    %v271 = vpack.c.b16 %v266, %v265
    %v272 = vpack.c.b16 %v268, %v267
    %v273 = vpack.c.b16 %v269, %v269
    %v278 = vsel %vm92, %v234, 0
    %v281 = vsel %vm92, %v235, 0
    %v284 = vsel %vm92, %v236, 0
    %v287 = vsel %vm92, %v237, 0
    %v290 = vsel %vm92, %v238, 0
    %v293 = vsel %vm92, %v239, 0
    %v296 = vsel %vm92, %v240, 0
    %v299 = vsel %vm92, %v241, 0
    %v302 = vsel %vm117, %v273, 0
    %304 = vmatprep.subr.bf16.mxu0 0
    %305 = vmatpush1.bf16.msra.mxu0 0
    %306 = vmatprep.subr.bf16.mxu0 0
    %307 = vmatpush1.bf16.msra.mxu0 0
    %308 = vmatprep.subr.bf16.mxu0 0
    %309 = vmatpush1.bf16.msra.mxu0 0
    %310 = vmatprep.subr.bf16.mxu0 0
    %311 = vmatpush1.bf16.msra.mxu0 0
    %312 = vmatprep.subr.bf16.mxu0 0
    %313 = vmatpush1.bf16.msra.mxu0 %v302
    %314 = vmatprep.subr.bf16.mxu0 0
    %315 = vmatpush1.bf16.msra.mxu0 %v272
    %316 = vmatprep.subr.bf16.mxu0 0
    %317 = vmatpush1.bf16.msra.mxu0 %v271
    %318 = vmatprep.subr.bf16.mxu0 0
    %319 = vmatpush1.bf16.msra.mxu0 %v270
    %320 = vmatprep.subr.bf16.mxu0 0
    %321 = vmatpush2.bf16.msra.mxu0 0
    %322 = vmatprep.subr.bf16.mxu0 0
    %323 = vmatpush2.bf16.msra.mxu0 0
    %324 = vmatprep.subr.bf16.mxu0 0
    %325 = vmatpush2.bf16.msra.mxu0 0
    %326 = vmatprep.subr.bf16.mxu0 0
    %327 = vmatpush2.bf16.msra.mxu0 0
    %328 = vmatprep.subr.bf16.mxu0 0
    %329 = vmatpush2.bf16.msra.mxu0 0
    %330 = vmatprep.subr.bf16.mxu0 0
    %331 = vmatpush2.bf16.msra.mxu0 0
    %332 = vmatprep.subr.bf16.mxu0 0
    %333 = vmatpush2.bf16.msra.mxu0 0
    %334 = vmatprep.subr.bf16.mxu0 0
    %335 = vmatpush2.bf16.msra.mxu0 0
    %336 = vmatprep.mubr.bf16.mxu0 0
    %337 = vmatmul.mubr.bf16.gmra.mxu0 %v278
    %v338 = vpop.f32.mrf.mxu0
    %v339 = vadd.f32 %v254, %v338
    %v340 = vpop.f32.mrf.mxu0
    %v341 = vpop.f32.mrf.mxu0
    %v342 = vadd.f32 %v254, %v341
    %v343 = vpop.f32.mrf.mxu0
    %344 = vmatprep.mubr.bf16.mxu0 0
    %345 = vmatmul.mubr.bf16.gmra.mxu0 %v281
    %v346 = vpop.f32.mrf.mxu0
    %v347 = vadd.f32 %v254, %v346
    %v348 = vpop.f32.mrf.mxu0
    %v349 = vpop.f32.mrf.mxu0
    %v350 = vadd.f32 %v254, %v349
    %v351 = vpop.f32.mrf.mxu0
    %352 = vmatprep.mubr.bf16.mxu0 0
    %353 = vmatmul.mubr.bf16.gmra.mxu0 %v284
    %v354 = vpop.f32.mrf.mxu0
    %v355 = vadd.f32 %v254, %v354
    %v356 = vpop.f32.mrf.mxu0
    %v357 = vpop.f32.mrf.mxu0
    %v358 = vadd.f32 %v254, %v357
    %v359 = vpop.f32.mrf.mxu0
    %360 = vmatprep.mubr.bf16.mxu0 0
    %361 = vmatmul.mubr.bf16.gmra.mxu0 %v287
    %v362 = vpop.f32.mrf.mxu0
    %v363 = vadd.f32 %v254, %v362
    %v364 = vpop.f32.mrf.mxu0
    %v365 = vpop.f32.mrf.mxu0
    %v366 = vadd.f32 %v254, %v365
    %v367 = vpop.f32.mrf.mxu0
    %368 = vmatprep.mubr.bf16.mxu0 0
    %369 = vmatmul.mubr.bf16.gmra.mxu0 %v290
    %v370 = vpop.f32.mrf.mxu0
    %v371 = vadd.f32 %v254, %v370
    %v372 = vpop.f32.mrf.mxu0
    %v373 = vpop.f32.mrf.mxu0
    %v374 = vadd.f32 %v254, %v373
    %v375 = vpop.f32.mrf.mxu0
    %376 = vmatprep.mubr.bf16.mxu0 0
    %377 = vmatmul.mubr.bf16.gmra.mxu0 %v293
    %v378 = vpop.f32.mrf.mxu0
    %v379 = vadd.f32 %v254, %v378
    %v380 = vpop.f32.mrf.mxu0
    %v381 = vpop.f32.mrf.mxu0
    %v382 = vadd.f32 %v254, %v381
    %v383 = vpop.f32.mrf.mxu0
    %384 = vmatprep.mubr.bf16.mxu0 0
    %385 = vmatmul.mubr.bf16.gmra.mxu0 %v296
    %v386 = vpop.f32.mrf.mxu0
    %v387 = vadd.f32 %v254, %v386
    %v388 = vpop.f32.mrf.mxu0
    %v389 = vpop.f32.mrf.mxu0
    %v390 = vadd.f32 %v254, %v389
    %v391 = vpop.f32.mrf.mxu0
    %392 = vmatprep.mubr.bf16.mxu0 0
    %393 = vmatmul.mubr.bf16.gmra.mxu0 %v299
    %v394 = vpop.f32.mrf.mxu0
    %v395 = vadd.f32 %v254, %v394
    %v396 = vpop.f32.mrf.mxu0
    %v397 = vpop.f32.mrf.mxu0
    %v398 = vadd.f32 %v254, %v397
    %v399 = vpop.f32.mrf.mxu0
    %400 = vdwg.mxu0
    %s401 = sld [smem:[#allocation2]]
    %vm402 = vcmp.ge.f32.partialorder %v339, 0.0
    %vm403 = vcmp.ge.f32.partialorder %v342, 0.0
    %vm404 = vcmp.ge.f32.partialorder %v347, 0.0
    %vm405 = vcmp.ge.f32.partialorder %v350, 0.0
    %vm406 = vcmp.ge.f32.partialorder %v355, 0.0
    %vm407 = vcmp.ge.f32.partialorder %v358, 0.0
    %vm408 = vcmp.ge.f32.partialorder %v363, 0.0
    %vm409 = vcmp.ge.f32.partialorder %v366, 0.0
    %vm410 = vcmp.ge.f32.partialorder %v371, 0.0
    %vm411 = vcmp.ge.f32.partialorder %v374, 0.0
    %vm412 = vcmp.ge.f32.partialorder %v379, 0.0
    %vm413 = vcmp.ge.f32.partialorder %v382, 0.0
    %vm414 = vcmp.ge.f32.partialorder %v387, 0.0
    %vm415 = vcmp.ge.f32.partialorder %v390, 0.0
    %vm416 = vcmp.ge.f32.partialorder %v395, 0.0
    %vm417 = vcmp.ge.f32.partialorder %v398, 0.0
    %v418 = vstv %s401
    %v419 = vmul.f32 %v418, %v339
    %v420 = vmul.f32 %v418, %v342
    %v421 = vmul.f32 %v418, %v347
    %v422 = vmul.f32 %v418, %v350
    %v423 = vmul.f32 %v418, %v355
    %v424 = vmul.f32 %v418, %v358
    %v425 = vmul.f32 %v418, %v363
    %v426 = vmul.f32 %v418, %v366
    %v427 = vmul.f32 %v418, %v371
    %v428 = vmul.f32 %v418, %v374
    %v429 = vmul.f32 %v418, %v379
    %v430 = vmul.f32 %v418, %v382
    %v431 = vmul.f32 %v418, %v387
    %v432 = vmul.f32 %v418, %v390
    %v433 = vmul.f32 %v418, %v395
    %v434 = vmul.f32 %v418, %v398
    %v435 = vsel %vm402, %v339, %v419
    %v436 = vsel %vm403, %v342, %v420
    %v437 = vsel %vm404, %v347, %v421
    %v438 = vsel %vm405, %v350, %v422
    %v439 = vsel %vm406, %v355, %v423
    %v440 = vsel %vm407, %v358, %v424
    %v441 = vsel %vm408, %v363, %v425
    %v442 = vsel %vm409, %v366, %v426
    %v443 = vsel %vm410, %v371, %v427
    %v444 = vsel %vm411, %v374, %v428
    %v445 = vsel %vm412, %v379, %v429
    %v446 = vsel %vm413, %v382, %v430
    %v447 = vsel %vm414, %v387, %v431
    %v448 = vsel %vm415, %v390, %v432
    %v449 = vsel %vm416, %v395, %v433
    %v450 = vsel %vm417, %v398, %v434
    %v451 = vld [vmem:[%s5] sm:$0x1]
    %v452 = vpack.c.bf16 %v436, %v435
    %v453 = vpack.c.bf16 %v438, %v437
    %v454 = vpack.c.bf16 %v440, %v439
    %v455 = vpack.c.bf16 %v442, %v441
    %v456 = vpack.c.bf16 %v444, %v443
    %v457 = vpack.c.bf16 %v446, %v445
    %v458 = vpack.c.bf16 %v448, %v447
    %v459 = vpack.c.bf16 %v450, %v449
    %s460 = sld [smem:[#allocation3]]
    %v461 = vstv %s460
    %vm462 = vcmask 818176
    %v464 = vsel %vm462, %v451, 0
    %v467 = vsel %vm462, %v452, 0
    %v470 = vsel %vm462, %v453, 0
    %v473 = vsel %vm462, %v454, 0
    %v476 = vsel %vm462, %v455, 0
    %v479 = vsel %vm462, %v456, 0
    %v482 = vsel %vm462, %v457, 0
    %v485 = vsel %vm462, %v458, 0
    %v488 = vsel %vm462, %v459, 0
    %490 = vmatprep.subr.bf16.mxu0 0
    %491 = vmatpush1.bf16.xpose.msra.mxu0 %v488
    %492 = vmatprep.subr.bf16.mxu0 0
    %493 = vmatpush1.bf16.xpose.msra.mxu0 %v485
    %494 = vmatprep.subr.bf16.mxu0 0
    %495 = vmatpush1.bf16.xpose.msra.mxu0 %v482
    %496 = vmatprep.subr.bf16.mxu0 0
    %497 = vmatpush1.bf16.xpose.msra.mxu0 %v479
    %498 = vmatprep.subr.bf16.mxu0 0
    %499 = vmatpush1.bf16.xpose.msra.mxu0 %v476
    %500 = vmatprep.subr.bf16.mxu0 0
    %501 = vmatpush1.bf16.xpose.msra.mxu0 %v473
    %502 = vmatprep.subr.bf16.mxu0 0
    %503 = vmatpush1.bf16.xpose.msra.mxu0 %v470
    %504 = vmatprep.subr.bf16.mxu0 0
    %505 = vmatpush1.bf16.xpose.msra.mxu0 %v467
    %506 = vmatprep.subr.bf16.mxu0 0
    %507 = vmatpush2.bf16.xpose.msra.mxu0 0
    %508 = vmatprep.subr.bf16.mxu0 0
    %509 = vmatpush2.bf16.xpose.msra.mxu0 0
    %510 = vmatprep.subr.bf16.mxu0 0
    %511 = vmatpush2.bf16.xpose.msra.mxu0 0
    %512 = vmatprep.subr.bf16.mxu0 0
    %513 = vmatpush2.bf16.xpose.msra.mxu0 0
    %514 = vmatprep.subr.bf16.mxu0 0
    %515 = vmatpush2.bf16.xpose.msra.mxu0 0
    %516 = vmatprep.subr.bf16.mxu0 0
    %517 = vmatpush2.bf16.xpose.msra.mxu0 0
    %518 = vmatprep.subr.bf16.mxu0 0
    %519 = vmatpush2.bf16.xpose.msra.mxu0 0
    %520 = vmatprep.subr.bf16.mxu0 0
    %521 = vmatpush2.bf16.xpose.msra.mxu0 0
    %522 = vmatprep.mubr.bf16.mxu0 0
    %523 = vmatmul.mubr.bf16.gmra.mxu0 %v464
    %v524 = vpop.f32.mrf.mxu0
    %v525 = vadd.f32 %v461, %v524
    %v526 = vpop.f32.mrf.mxu0
    %v527 = vpop.f32.mrf.mxu0
    %v528 = vpop.f32.mrf.mxu0
    %529 = vdwg.mxu0
    %v530 = vsub.f32 0.0, %v525
    %v531 = vmul.f32 %v530, 1.442695
    %v532 = vpow.pop %v531
    %v533 = vadd.f32 %v532, 1.0
    %v534 = vrcp.pop %v533
    %535 = vst [vmem:[#allocation4] sm:$0x1] %v534
    // Predicated region
    $region34: #{tpu_custom_call.1} parent=1 // pred_check
      _
    $region35: #{tpu_custom_call.1} parent=1 // pred_check_branch
      %537 = sbr.rel (0) target = $region37
    $region36: #{tpu_custom_call.1} parent=1 // pred_region
      %s539 = ssub.s32 16, 16
      %540 = vsyncadd [#allocation5], %s539
      %s542 = sshll.u32 [#allocation4], 4
      %s543 = int_to_ptr.vmem [resolvable:$true] %s542
      %545 = dma.vmem_to_hbm [thread:$0]  %s543, 16, %s8, [#allocation5]
    $region37: #{tpu_custom_call.1} parent=1 // pred_fallthru
      _
    // Predicated region
    $region38: #{tpu_custom_call.1} parent=1 // pred_check
      _
    $region39: #{tpu_custom_call.1} parent=1 // pred_check_branch
      %547 = sbr.rel (0) target = $region41
    $region40: #{tpu_custom_call.1} parent=1 // pred_region
      %548 = dma.done [#allocation5], 16
    $region41: #{tpu_custom_call.1} parent=1 // pred_fallthru
      _
    %549 = vsyncpa [#allocation5], 1

</llo_original>
